<compile_context>
chip_gen: v6e
topology: v6e:2x2x1
jax: 0.10.0
libtpu: 0.0.40
codegen_flags: <defaults>
</compile_context>

<pallas_src>
import jax
import jax.numpy as jnp
from jax.experimental import pallas as pl
from jax.experimental.pallas import tpu as pltpu

K_MAX = 50      # the PyTorch forward truncates pubmed_docs to 50
DOC_TILE = 8    # docs reduced per grid step (bucketed padding, no 50-slot zero DMA)
LANE = 128      # pad num_labels up to a lane-dense multiple of 128


def _bienc_average_kernel(inv_k_ref, note_ref, lit_ref, wn_ref, wl_ref, b_ref,
                          out_ref, acc_ref):
    k = pl.program_id(1)

    @pl.when(k == 0)
    def _():
        acc_ref[...] = jnp.zeros_like(acc_ref)

    # f32 accumulation of the doc-axis sum (bf16 tiles upcast before the VPU sum).
    acc_ref[...] += jnp.sum(lit_ref[...].astype(jnp.float32), axis=0)

    @pl.when(k == pl.num_programs(1) - 1)
    def _():
        # concat([note, mean_lit]) @ W.T == note @ Wn + (1/K) * ((sum_k lit_k) @ Wl)
        # The 1/K scale hits the small (B, Lp) matmul result, not the (B, H) sum.
        lit_sum = acc_ref[...].astype(wl_ref.dtype)
        logits = (
            jnp.dot(note_ref[...], wn_ref[...], preferred_element_type=jnp.float32)
            + inv_k_ref[0]
            * jnp.dot(lit_sum, wl_ref[...], preferred_element_type=jnp.float32)
            + b_ref[...]
        )
        out_ref[...] = logits.astype(out_ref.dtype)


def prepare_predictor_params(w_pred, b_pred, hidden_size, compute_dtype=jnp.bfloat16):
    """One-time parameter prep (hoisted out of the forward).
       w_pred: (num_labels, 2H) PyTorch nn.Linear layout; b_pred: (num_labels,).
       Returns (W_note (H,Lp), W_lit (H,Lp), bias (1,Lp) f32, num_labels)."""
    L = b_pred.shape[0]
    Lp = ((L + LANE - 1) // LANE) * LANE      # lane-dense output; do NOT pad beyond 128
    pad = Lp - L
    w_t = jnp.transpose(w_pred).astype(jnp.float32)             # (2H, L)
    wn = jnp.pad(w_t[:hidden_size, :], ((0, 0), (0, pad))).astype(compute_dtype)
    wl = jnp.pad(w_t[hidden_size:, :], ((0, 0), (0, pad))).astype(compute_dtype)
    b2 = jnp.pad(b_pred.astype(jnp.float32), (0, pad)).reshape(1, Lp)
    return wn, wl, b2, L


def lit_aug_bienc_average(note_reps, lit_stack, inv_k, wn, wl, b2):
    """note_reps: (B, H); lit_stack: (Kp, B, H) zero-padded, Kp % DOC_TILE == 0;
       inv_k: (1,) f32 = 1/num_real_docs; wn/wl: (H, Lp); b2: (1, Lp) f32.
       Returns padded logits (B, Lp) f32; caller slices to (B, num_labels)."""
    B, H = note_reps.shape
    Kp = lit_stack.shape[0]
    Lp = b2.shape[1]
    assert Kp % DOC_TILE == 0
    nk = Kp // DOC_TILE

    # Batch tiling only at scale (shards across v7x's two TensorCores); pure
    # overhead at tiny shapes, so gated on B.
    bt = 128 if (B >= 256 and B % 128 == 0) else B
    nb = B // bt

    itemsize = jnp.dtype(note_reps.dtype).itemsize
    est = (2 * DOC_TILE * bt * H * itemsize          # double-buffered lit tile
           + 2 * (bt * H + 2 * H * Lp) * itemsize    # note + split weights
           + 2 * (Lp + bt * Lp) * 4                  # bias + output
           + bt * H * 4)                             # f32 accumulator scratch
    vmem_limit = max(2 * int(est), 16 << 20)

    grid_spec = pltpu.PrefetchScalarGridSpec(
        num_scalar_prefetch=0,
        grid=(nb, nk),
        in_specs=[
            pl.BlockSpec(memory_space=pltpu.MemorySpace.SMEM),              # 1/K (1,)
            pl.BlockSpec((bt, H), lambda b, k: (b, 0)),                     # note (B,H)
            pl.BlockSpec((DOC_TILE, bt, H), lambda b, k: (k, b, 0)),        # lit tile
            pl.BlockSpec((H, Lp), lambda b, k: (0, 0)),                     # W_note
            pl.BlockSpec((H, Lp), lambda b, k: (0, 0)),                     # W_lit
            pl.BlockSpec((1, Lp), lambda b, k: (0, 0)),                     # bias
        ],
        out_specs=pl.BlockSpec((bt, Lp), lambda b, k: (b, 0)),
        scratch_shapes=[pltpu.VMEM((bt, H), jnp.float32)],
    )
    return pl.pallas_call(
        _bienc_average_kernel,
        out_shape=jax.ShapeDtypeStruct((B, Lp), jnp.float32),
        grid_spec=grid_spec,
        compiler_params=pltpu.CompilerParams(
            dimension_semantics=("parallel", "arbitrary"),
            vmem_limit_bytes=vmem_limit),
    )(inv_k, note_reps, lit_stack, wn, wl, b2)


def lit_aug_predictor_bienc_forward(note_reps, pubmed_lit_reps, wn, wl, b2,
                                    num_labels, compute_dtype=jnp.bfloat16):
    """Python-level glue reproducing the PyTorch forward (strategy='average'):
    truncate to 50 docs; empty doc list -> a single zero lit rep.  Docs are padded
    only to the next DOC_TILE boundary (bucketed) instead of to 50, and 1/K is a
    runtime SMEM scalar, so one compiled kernel serves all doc counts in a bucket."""
    if len(pubmed_lit_reps) >= K_MAX:
        pubmed_lit_reps = pubmed_lit_reps[:K_MAX]
    B, H = note_reps.shape
    n_docs = len(pubmed_lit_reps)
    if n_docs == 0:
        n_eff = 1                         # mean over a single zero rep == zero rep
        lit_stack = jnp.zeros((DOC_TILE, B, H), compute_dtype)
    else:
        n_eff = n_docs
        kp = ((n_docs + DOC_TILE - 1) // DOC_TILE) * DOC_TILE
        lit_stack = jnp.stack(pubmed_lit_reps, axis=0).astype(compute_dtype)
        if kp != n_docs:
            lit_stack = jnp.pad(lit_stack, ((0, kp - n_docs), (0, 0), (0, 0)))
    inv_k = jnp.full((1,), 1.0 / float(n_eff), dtype=jnp.float32)
    logits_padded = lit_aug_bienc_average(
        note_reps.astype(compute_dtype), lit_stack, inv_k, wn, wl, b2)
    return (None, logits_padded[:, :num_labels])


def _reference(note_reps, pubmed_lit_reps, w_pred, b_pred):
    lit = list(pubmed_lit_reps[:K_MAX]) if len(pubmed_lit_reps) >= K_MAX \
        else list(pubmed_lit_reps)
    if len(lit) == 0:
        lit = [jnp.zeros_like(note_reps)]
    final_lit = jnp.mean(jnp.stack(lit, axis=0), axis=0)
    final_rep = jnp.concatenate([note_reps, final_lit], axis=1)
    return final_rep @ w_pred.T + b_pred


if __name__ == "__main__":
    # Small shapes consistent with the module: batch=2, hidden=32, num_labels=4.
    B, H, L = 2, 32, 4

    key = jax.random.PRNGKey(0)
    k_note, k_lit, k_w, k_b = jax.random.split(key, 4)

    note_reps = jax.random.normal(k_note, (B, H), dtype=jnp.float32)
    # Deterministic init of the predictor: nn.Linear(2*H, L)
    w_pred = jax.random.uniform(k_w, (L, 2 * H), dtype=jnp.float32,
                                minval=-0.1, maxval=0.1)
    b_pred = jax.random.uniform(k_b, (L,), dtype=jnp.float32,
                                minval=-0.1, maxval=0.1)

    # One-time (hoisted) parameter preparation (bf16 weights for the MXU).
    wn, wl, b2, num_labels = prepare_predictor_params(w_pred, b_pred, H)

    def make_docs(k):
        return [jax.random.normal(jax.random.fold_in(k_lit, i), (B, H),
                                  dtype=jnp.float32) for i in range(k)]

    TOL = 2e-2  # bf16 matmul inputs vs f32 reference

    # Main path: K=3 documents (single doc tile).
    docs3 = make_docs(3)
    _, logits = lit_aug_predictor_bienc_forward(note_reps, docs3, wn, wl, b2, num_labels)
    logits = jax.block_until_ready(logits)
    ref = _reference(note_reps, docs3, w_pred, b_pred)
    assert logits.shape == (B, L)
    assert jnp.allclose(logits, ref, atol=TOL, rtol=TOL), (logits, ref)

    # Multi-tile reduction path: K=19 documents -> 3 doc tiles (exercises the
    # "arbitrary" K-grid accumulation with pl.when init/finalize).
    docs19 = make_docs(19)
    _, logits19 = lit_aug_predictor_bienc_forward(note_reps, docs19, wn, wl, b2, num_labels)
    logits19 = jax.block_until_ready(logits19)
    ref19 = _reference(note_reps, docs19, w_pred, b_pred)
    assert jnp.allclose(logits19, ref19, atol=TOL, rtol=TOL), (logits19, ref19)

    # Zero-document path (inv_k=1, one zero doc tile).
    _, logits0 = lit_aug_predictor_bienc_forward(note_reps, [], wn, wl, b2, num_labels)
    logits0 = jax.block_until_ready(logits0)
    ref0 = _reference(note_reps, [], w_pred, b_pred)
    assert jnp.allclose(logits0, ref0, atol=TOL, rtol=TOL), (logits0, ref0)

    print("KERNEL_OK")
</pallas_src>

<mosaic_0001>
module attributes {stable_mosaic.version = 11 : i64} {
  func.func @_bienc_average_kernel(%arg0: i32, %arg1: i32, %arg2: memref<1xf32, #tpu.memory_space<smem>>, %arg3: memref<2x32xbf16, #tpu.memory_space<vmem>>, %arg4: memref<8x2x32xbf16, #tpu.memory_space<vmem>>, %arg5: memref<32x128xbf16, #tpu.memory_space<vmem>>, %arg6: memref<32x128xbf16, #tpu.memory_space<vmem>>, %arg7: memref<1x128xf32, #tpu.memory_space<vmem>>, %arg8: memref<2x128xf32, #tpu.memory_space<vmem>>, %arg9: memref<2x32xf32, #tpu.memory_space<vmem>>) attributes {dimension_semantics = [#tpu.dimension_semantics<parallel>, #tpu.dimension_semantics<arbitrary>], iteration_bounds = array<i64: 1, 1>, scalar_prefetch = 0 : i64, scratch_operands = 1 : i64, tpu.core_type = #tpu.core_type<tc>, window_params = [{transform_indices = @transform_0, window_bounds = array<i64: 1>}, {transform_indices = @transform_1, window_bounds = array<i64: 2, 32>}, {transform_indices = @transform_2, window_bounds = array<i64: 8, 2, 32>}, {pipeline_mode = #tpu.pipeline_mode<synchronous>, transform_indices = @transform_3, window_bounds = array<i64: 32, 128>}, {pipeline_mode = #tpu.pipeline_mode<synchronous>, transform_indices = @transform_4, window_bounds = array<i64: 32, 128>}, {pipeline_mode = #tpu.pipeline_mode<synchronous>, transform_indices = @transform_5, window_bounds = array<i64: 1, 128>}, {transform_indices = @transform_6, window_bounds = array<i64: 2, 128>}]} {
    %c0_i32 = arith.constant 0 : i32
    %0 = arith.cmpi eq, %arg1, %c0_i32 : i32
    %1 = arith.extui %0 : i1 to i32
    %c0_i32_0 = arith.constant 0 : i32
    %2 = arith.cmpi ne, %1, %c0_i32_0 : i32
    scf.if %2 {
      %cst_9 = arith.constant 0.000000e+00 : f32
      %12 = vector.broadcast %cst_9 : f32 to vector<2x32xf32>
      %c0_10 = arith.constant 0 : index
      %c0_11 = arith.constant 0 : index
      %13 = vector.load %arg9[%c0_10, %c0_11] : memref<2x32xf32, #tpu.memory_space<vmem>>, vector<2x32xf32>
      tpu.vector_store %arg9[%c0_10, %c0_11], %12 {strides = array<i32>} : memref<2x32xf32, #tpu.memory_space<vmem>>, vector<2x32xf32>,
    } else {
    }
    %c0 = arith.constant 0 : index
    %c0_1 = arith.constant 0 : index
    %3 = vector.load %arg9[%c0, %c0_1] : memref<2x32xf32, #tpu.memory_space<vmem>>, vector<2x32xf32>
    %c0_2 = arith.constant 0 : index
    %c0_3 = arith.constant 0 : index
    %c0_4 = arith.constant 0 : index
    %4 = vector.load %arg4[%c0_2, %c0_3, %c0_4] : memref<8x2x32xbf16, #tpu.memory_space<vmem>>, vector<8x2x32xbf16>
    %5 = arith.extf %4 : vector<8x2x32xbf16> to vector<8x2x32xf32>
    %cst = arith.constant dense<0.000000e+00> : vector<2x32xf32>
    %6 = vector.multi_reduction <add>, %5, %cst [0] : vector<8x2x32xf32> to vector<2x32xf32>
    %7 = arith.addf %3, %6 : vector<2x32xf32>
    %c0_5 = arith.constant 0 : index
    %c0_6 = arith.constant 0 : index
    %8 = vector.load %arg9[%c0_5, %c0_6] : memref<2x32xf32, #tpu.memory_space<vmem>>, vector<2x32xf32>
    tpu.vector_store %arg9[%c0_5, %c0_6], %7 {strides = array<i32>} : memref<2x32xf32, #tpu.memory_space<vmem>>, vector<2x32xf32>,
    %c0_i32_7 = arith.constant 0 : i32
    %9 = arith.cmpi eq, %arg1, %c0_i32_7 : i32
    %10 = arith.extui %9 : i1 to i32
    %c0_i32_8 = arith.constant 0 : i32
    %11 = arith.cmpi ne, %10, %c0_i32_8 : i32
    scf.if %11 {
      %c0_9 = arith.constant 0 : index
      %c0_10 = arith.constant 0 : index
      %12 = vector.load %arg9[%c0_9, %c0_10] : memref<2x32xf32, #tpu.memory_space<vmem>>, vector<2x32xf32>
      %13 = arith.truncf %12 : vector<2x32xf32> to vector<2x32xbf16>
      %c0_11 = arith.constant 0 : index
      %c0_12 = arith.constant 0 : index
      %14 = vector.load %arg3[%c0_11, %c0_12] : memref<2x32xbf16, #tpu.memory_space<vmem>>, vector<2x32xbf16>
      %c0_13 = arith.constant 0 : index
      %c0_14 = arith.constant 0 : index
      %15 = vector.load %arg5[%c0_13, %c0_14] : memref<32x128xbf16, #tpu.memory_space<vmem>>, vector<32x128xbf16>
      %cst_15 = arith.constant dense<0.000000e+00> : vector<2x128xf32>
      %16 = tpu.matmul %14, %15, %cst_15 {dimension_numbers = #tpu.dot_dimension_numbers<[1], [0], [0], [1], [0, 0, 1, 1], [], []>} : vector<2x32xbf16>, vector<32x128xbf16>, vector<2x128xf32> -> vector<2x128xf32>
      %c0_16 = arith.constant 0 : index
      %17 = memref.load %arg2[%c0_16] : memref<1xf32, #tpu.memory_space<smem>>
      %c0_17 = arith.constant 0 : index
      %c0_18 = arith.constant 0 : index
      %18 = vector.load %arg6[%c0_17, %c0_18] : memref<32x128xbf16, #tpu.memory_space<vmem>>, vector<32x128xbf16>
      %cst_19 = arith.constant dense<0.000000e+00> : vector<2x128xf32>
      %19 = tpu.matmul %13, %18, %cst_19 {dimension_numbers = #tpu.dot_dimension_numbers<[1], [0], [0], [1], [0, 0, 1, 1], [], []>} : vector<2x32xbf16>, vector<32x128xbf16>, vector<2x128xf32> -> vector<2x128xf32>
      %20 = vector.broadcast %17 : f32 to vector<2x128xf32>
      %21 = arith.mulf %20, %19 : vector<2x128xf32>
      %22 = arith.addf %16, %21 : vector<2x128xf32>
      %c0_20 = arith.constant 0 : index
      %c0_21 = arith.constant 0 : index
      %23 = vector.load %arg7[%c0_20, %c0_21] : memref<1x128xf32, #tpu.memory_space<vmem>>, vector<1x128xf32>
      %24 = vector.broadcast %23 : vector<1x128xf32> to vector<2x128xf32>
      %25 = arith.addf %22, %24 : vector<2x128xf32>
      %c0_22 = arith.constant 0 : index
      %c0_23 = arith.constant 0 : index
      %26 = vector.load %arg8[%c0_22, %c0_23] : memref<2x128xf32, #tpu.memory_space<vmem>>, vector<2x128xf32>
      tpu.vector_store %arg8[%c0_22, %c0_23], %25 {strides = array<i32>} : memref<2x128xf32, #tpu.memory_space<vmem>>, vector<2x128xf32>,
    } else {
    }
    return
  }
  func.func @transform_0(%arg0: i32, %arg1: i32) -> i32 {
    %c0_i32 = arith.constant 0 : i32
    %c0_i32_0 = arith.constant 0 : i32
    return %c0_i32 : i32
  }
  func.func @transform_1(%arg0: i32, %arg1: i32) -> (i32, i32) {
    %c0_i32 = arith.constant 0 : i32
    %c0_i32_0 = arith.constant 0 : i32
    return %arg0, %c0_i32 : i32, i32
  }
  func.func @transform_2(%arg0: i32, %arg1: i32) -> (i32, i32, i32) {
    %c0_i32 = arith.constant 0 : i32
    %c0_i32_0 = arith.constant 0 : i32
    return %arg1, %arg0, %c0_i32 : i32, i32, i32
  }
  func.func @transform_3(%arg0: i32, %arg1: i32) -> (i32, i32) {
    %c0_i32 = arith.constant 0 : i32
    %c0_i32_0 = arith.constant 0 : i32
    %c0_i32_1 = arith.constant 0 : i32
    return %c0_i32, %c0_i32_0 : i32, i32
  }
  func.func @transform_4(%arg0: i32, %arg1: i32) -> (i32, i32) {
    %c0_i32 = arith.constant 0 : i32
    %c0_i32_0 = arith.constant 0 : i32
    %c0_i32_1 = arith.constant 0 : i32
    return %c0_i32, %c0_i32_0 : i32, i32
  }
  func.func @transform_5(%arg0: i32, %arg1: i32) -> (i32, i32) {
    %c0_i32 = arith.constant 0 : i32
    %c0_i32_0 = arith.constant 0 : i32
    %c0_i32_1 = arith.constant 0 : i32
    return %c0_i32, %c0_i32_0 : i32, i32
  }
  func.func @transform_6(%arg0: i32, %arg1: i32) -> (i32, i32) {
    %c0_i32 = arith.constant 0 : i32
    %c0_i32_0 = arith.constant 0 : i32
    return %arg0, %c0_i32 : i32, i32
  }
}

</mosaic_0001>

<llo_original>
// kernel: tpu_custom_call.1
$region0: #{tpu_custom_call.1}
  #allocation0 [shape = 'u32[]', space=smem, size = 0x4, offset = 0x4, fixed_abs, tag = 'smem constant byte address 0x4 - core index']
  #allocation1 [shape = 'u32[144,128]{1,0:T(1,128)}', space=vmem, size = 0x12000, scoped, tag = 'internal scratch']
  #allocation2 [shape = 'f32[2,32]{1,0:T(2,128)}', space=vmem, size = 0x400, scoped, tag = 'scratch operand']
  #allocation3 [shape = 'f32[1]{0:T(128)S(6)}', space=smem, size = 0x200, scoped, tag = 'scoped memory for tpu_custom_call.1']
  %s0 = inlined_call_operand.<no memory space> [shape: f32[1], index: 0, kind: input, shape index: {}]
  %s1 = inlined_call_operand.vmem [shape: bf16[2,32], index: 1, kind: input, shape index: {}]
  %s2 = inlined_call_operand.hbm [shape: bf16[8,2,32], index: 2, kind: input, shape index: {}]
  %s3 = inlined_call_operand.hbm [shape: bf16[32,128], index: 3, kind: input, shape index: {}]
  %s4 = inlined_call_operand.hbm [shape: bf16[32,128], index: 4, kind: input, shape index: {}]
  %s5 = inlined_call_operand.vmem [shape: f32[1,128], index: 5, kind: input, shape index: {}]
  %s6 = inlined_call_operand.hbm [shape: f32[2,128], index: 6, kind: output, shape index: {}]
  %s7 = sld [smem:[#allocation0]]
  $region54: #{tpu_custom_call.1} parent=0
    _
  %s9 = ssub.s32 1, %s7
  %s10 = scalar_select 0, %s9, %s7
  %11 = sst [smem:[#allocation3]] %s0
  $region1: #{tpu_custom_call.1} parent=0
    #allocation4 [shape = 'u8[4096]{0}', space=vmem, size = 0x1000, scoped, tag = 'input window, operand 2, single buffered']
    #allocation5 [shape = 's32[1]{0}', space=sflag, size = 0x4, scoped, tag = 'scoped memory for tpu_custom_call.1']
    #allocation6 [shape = 's32[1]{0}', space=sflag, size = 0x4, scoped, tag = 'scoped memory for tpu_custom_call.1']
    #allocation7 [shape = 'u8[8192]{0}', space=vmem, size = 0x2000, scoped, tag = 'input window, operand 3, single buffered']
    #allocation8 [shape = 's32[1]{0}', space=sflag, size = 0x4, scoped, tag = 'scoped memory for tpu_custom_call.1']
    #allocation9 [shape = 'u8[8192]{0}', space=vmem, size = 0x2000, scoped, tag = 'input window, operand 4, single buffered']
    #allocation10 [shape = 'u8[1024]{0}', space=vmem, size = 0x400, scoped, tag = 'output window, operand 0, single buffered']
    %12 = vsyncpa [#allocation5], 0
    %13 = vsyncpa [#allocation8], 0
    %14 = vsyncpa [#allocation6], 0
    // Predicated region
    $region2: #{tpu_custom_call.1} parent=1 // pred_check
      _
    $region3: #{tpu_custom_call.1} parent=1 // pred_check_branch
      %16 = sbr.rel (0) target = $region5
    $region4: #{tpu_custom_call.1} parent=1 // pred_region
      _
    $region5: #{tpu_custom_call.1} parent=1 // pred_fallthru
      _
    // Predicated region
    $region6: #{tpu_custom_call.1} parent=1 // pred_check
      _
    $region7: #{tpu_custom_call.1} parent=1 // pred_check_branch
      %18 = sbr.rel (0) target = $region9
    $region8: #{tpu_custom_call.1} parent=1 // pred_region
      _
    $region9: #{tpu_custom_call.1} parent=1 // pred_fallthru
      _
    // Predicated region
    $region10: #{tpu_custom_call.1} parent=1 // pred_check
      _
    $region11: #{tpu_custom_call.1} parent=1 // pred_check_branch
      %20 = sbr.rel (0) target = $region13
    $region12: #{tpu_custom_call.1} parent=1 // pred_region
      %s22 = ssub.s32 128, 128
      %23 = vsyncadd [#allocation5], %s22
      %s24 = sshll.u32 [#allocation4], 4
      %s25 = int_to_ptr.vmem [resolvable:$true] %s24
      %30 = dma.hbm_to_vmem [thread:$0]  %s2, 128, %s25, [#allocation5], 16, 16, 1
    $region13: #{tpu_custom_call.1} parent=1 // pred_fallthru
      _
    // Predicated region
    $region14: #{tpu_custom_call.1} parent=1 // pred_check
      _
    $region15: #{tpu_custom_call.1} parent=1 // pred_check_branch
      %32 = sbr.rel (0) target = $region17
    $region16: #{tpu_custom_call.1} parent=1 // pred_region
      %s34 = ssub.s32 256, 256
      %35 = vsyncadd [#allocation8], %s34
      %s36 = sshll.u32 [#allocation7], 4
      %s37 = int_to_ptr.vmem [resolvable:$true] %s36
      %42 = dma.hbm_to_vmem [thread:$0]  %s3, 256, %s37, [#allocation8], 64, 64, 4
    $region17: #{tpu_custom_call.1} parent=1 // pred_fallthru
      _
    // Predicated region
    $region18: #{tpu_custom_call.1} parent=1 // pred_check
      _
    $region19: #{tpu_custom_call.1} parent=1 // pred_check_branch
      %44 = sbr.rel (0) target = $region21
    $region20: #{tpu_custom_call.1} parent=1 // pred_region
      %s46 = ssub.s32 256, 256
      %47 = vsyncadd [#allocation8], %s46
      %s48 = sshll.u32 [#allocation9], 4
      %s49 = int_to_ptr.vmem [resolvable:$true] %s48
      %54 = dma.hbm_to_vmem [thread:$0]  %s4, 256, %s49, [#allocation8], 64, 64, 4
    $region21: #{tpu_custom_call.1} parent=1 // pred_fallthru
      _
    // Predicated region
    $region22: #{tpu_custom_call.1} parent=1 // pred_check
      _
    $region23: #{tpu_custom_call.1} parent=1 // pred_check_branch
      %56 = sbr.rel (0) target = $region25
    $region24: #{tpu_custom_call.1} parent=1 // pred_region
      _
    $region25: #{tpu_custom_call.1} parent=1 // pred_fallthru
      _
    // Predicated region
    $region26: #{tpu_custom_call.1} parent=1 // pred_check
      _
    $region27: #{tpu_custom_call.1} parent=1 // pred_check_branch
      %58 = sbr.rel (0) target = $region29
    $region28: #{tpu_custom_call.1} parent=1 // pred_region
      %59 = dma.done [#allocation5], 128
    $region29: #{tpu_custom_call.1} parent=1 // pred_fallthru
      _
    // Predicated region
    $region30: #{tpu_custom_call.1} parent=1 // pred_check
      _
    $region31: #{tpu_custom_call.1} parent=1 // pred_check_branch
      %61 = sbr.rel (0) target = $region33
    $region32: #{tpu_custom_call.1} parent=1 // pred_region
      %62 = dma.done [#allocation8], 256
    $region33: #{tpu_custom_call.1} parent=1 // pred_fallthru
      _
    // Predicated region
    $region34: #{tpu_custom_call.1} parent=1 // pred_check
      _
    $region35: #{tpu_custom_call.1} parent=1 // pred_check_branch
      %64 = sbr.rel (0) target = $region37
    $region36: #{tpu_custom_call.1} parent=1 // pred_region
      %65 = dma.done [#allocation8], 256
    $region37: #{tpu_custom_call.1} parent=1 // pred_fallthru
      _
    %p67 = scmp.eq.s32.totalorder 0, 0
    // Predicated region
    $region38: #{tpu_custom_call.1} parent=1 // pred_check
      %p68 = pneg %p67
    $region39: #{tpu_custom_call.1} parent=1 // pred_check_branch
      %70 = sbr.rel (%p68) target = $region41
    $region40: #{tpu_custom_call.1} parent=1 // pred_region
      %vm71 = vcmask 254976
      %72 = vst.msk [vmem:[#allocation2] sm:$0x3] %vm71, 0.0
    $region41: #{tpu_custom_call.1} parent=1 // pred_fallthru
      _
    %v73 = vld [vmem:[#allocation2] sm:$0x3]
    %v74 = vld [vmem:[#allocation4] sm:$0x1]
    %v75 = vld [vmem:[#allocation4 + $0x1] sm:$0x1]
    %v76 = vld [vmem:[#allocation4 + $0x2] sm:$0x1]
    %v77 = vld [vmem:[#allocation4 + $0x3] sm:$0x1]
    %v78 = vld [vmem:[#allocation4 + $0x4] sm:$0x1]
    %v79 = vld [vmem:[#allocation4 + $0x5] sm:$0x1]
    %v80 = vld [vmem:[#allocation4 + $0x6] sm:$0x1]
    %v81 = vld [vmem:[#allocation4 + $0x7] sm:$0x1]
    %v82 = vunpack.c.l.bf16 %v74
    %v83 = vunpack.c.l.bf16 %v75
    %v84 = vunpack.c.l.bf16 %v76
    %v85 = vunpack.c.l.bf16 %v77
    %v86 = vunpack.c.l.bf16 %v78
    %v87 = vunpack.c.l.bf16 %v79
    %v88 = vunpack.c.l.bf16 %v80
    %v89 = vunpack.c.l.bf16 %v81
    %vm90 = vcmask 254976
    %v91 = vsel %vm90, %v82, 0.0
    %v92 = vsel %vm90, %v83, 0.0
    %v93 = vadd.f32 %v91, %v92
    %v94 = vsel %vm90, %v84, 0.0
    %v95 = vadd.f32 %v93, %v94
    %v96 = vsel %vm90, %v85, 0.0
    %v97 = vadd.f32 %v95, %v96
    %v98 = vsel %vm90, %v86, 0.0
    %v99 = vadd.f32 %v97, %v98
    %v100 = vsel %vm90, %v87, 0.0
    %v101 = vadd.f32 %v99, %v100
    %v102 = vsel %vm90, %v88, 0.0
    %v103 = vadd.f32 %v101, %v102
    %v104 = vsel %vm90, %v89, 0.0
    %v105 = vadd.f32 %v103, %v104
    %v106 = vadd.f32 %v73, %v105
    %107 = vst.msk [vmem:[#allocation2] sm:$0x3] %vm90, %v106
    // Predicated region
    $region42: #{tpu_custom_call.1} parent=1 // pred_check
      %p108 = pneg %p67
    $region43: #{tpu_custom_call.1} parent=1 // pred_check_branch
      %110 = sbr.rel (%p108) target = $region45
    $region44: #{tpu_custom_call.1} parent=1 // pred_region
      %v111 = vld [vmem:[#allocation2] sm:$0x3]
      %v112 = vpack.c.bf16 %v111, %v111
      %v113 = vld [vmem:[%s1] sm:$0x1]
      %v114 = vld [vmem:[#allocation7] sm:$0xf]
      %v115 = vld [vmem:[#allocation7 + $0x4] sm:$0xf]
      %v116 = vld [vmem:[#allocation7 + $0x8] sm:$0xf]
      %v117 = vld [vmem:[#allocation7 + $0xc] sm:$0xf]
      %s118 = sld [smem:[#allocation3]]
      %v119 = vld [vmem:[#allocation9] sm:$0xf]
      %v120 = vld [vmem:[#allocation9 + $0x4] sm:$0xf]
      %v121 = vld [vmem:[#allocation9 + $0x8] sm:$0xf]
      %v122 = vld [vmem:[#allocation9 + $0xc] sm:$0xf]
      %v127 = vunpack.c.l.b16 %v119
      %v128 = vunpack.c.l.b16 %v120
      %v129 = vunpack.c.l.b16 %v121
      %v130 = vunpack.c.l.b16 %v122
      %v131 = vpack.c.b16 %v128, %v127
      %v132 = vpack.c.b16 %v130, %v129
      %vm135 = vcmask 261120
      %v137 = vsel %vm135, %v112, 0
      %139 = vmatprep.subr.bf16.mxu0 0
      %140 = vmatpush1.bf16.msra.mxu0 0
      %141 = vmatprep.subr.bf16.mxu0 0
      %142 = vmatpush1.bf16.msra.mxu0 0
      %143 = vmatprep.subr.bf16.mxu0 0
      %144 = vmatpush1.bf16.msra.mxu0 0
      %145 = vmatprep.subr.bf16.mxu0 0
      %146 = vmatpush1.bf16.msra.mxu0 0
      %147 = vmatprep.subr.bf16.mxu0 0
      %148 = vmatpush1.bf16.msra.mxu0 0
      %149 = vmatprep.subr.bf16.mxu0 0
      %150 = vmatpush1.bf16.msra.mxu0 0
      %151 = vmatprep.subr.bf16.mxu0 0
      %152 = vmatpush1.bf16.msra.mxu0 %v132
      %153 = vmatprep.subr.bf16.mxu0 0
      %154 = vmatpush1.bf16.msra.mxu0 %v131
      %155 = vmatprep.subr.bf16.mxu0 0
      %156 = vmatpush2.bf16.msra.mxu0 0
      %157 = vmatprep.subr.bf16.mxu0 0
      %158 = vmatpush2.bf16.msra.mxu0 0
      %159 = vmatprep.subr.bf16.mxu0 0
      %160 = vmatpush2.bf16.msra.mxu0 0
      %161 = vmatprep.subr.bf16.mxu0 0
      %162 = vmatpush2.bf16.msra.mxu0 0
      %163 = vmatprep.subr.bf16.mxu0 0
      %164 = vmatpush2.bf16.msra.mxu0 0
      %165 = vmatprep.subr.bf16.mxu0 0
      %166 = vmatpush2.bf16.msra.mxu0 0
      %167 = vmatprep.subr.bf16.mxu0 0
      %168 = vmatpush2.bf16.msra.mxu0 0
      %169 = vmatprep.subr.bf16.mxu0 0
      %170 = vmatpush2.bf16.msra.mxu0 0
      %171 = vmatprep.mubr.bf16.mxu0 0
      %172 = vmatmul.mubr.bf16.gmra.mxu0 %v137
      %v173 = vpop.f32.mrf.mxu0
      %v174 = vadd.f32 0.0, %v173
      %v175 = vpop.f32.mrf.mxu0
      %v176 = vpop.f32.mrf.mxu0
      %v177 = vpop.f32.mrf.mxu0
      %178 = vdwg.mxu0
      %v179 = vstv %s118
      %v180 = vmul.f32 %v179, %v174
      %v185 = vunpack.c.l.b16 %v114
      %v186 = vunpack.c.l.b16 %v115
      %v187 = vunpack.c.l.b16 %v116
      %v188 = vunpack.c.l.b16 %v117
      %v189 = vpack.c.b16 %v186, %v185
      %v190 = vpack.c.b16 %v188, %v187
      %v194 = vsel %vm135, %v113, 0
      %196 = vmatprep.subr.bf16.mxu0 0
      %197 = vmatpush1.bf16.msra.mxu0 0
      %198 = vmatprep.subr.bf16.mxu0 0
      %199 = vmatpush1.bf16.msra.mxu0 0
      %200 = vmatprep.subr.bf16.mxu0 0
      %201 = vmatpush1.bf16.msra.mxu0 0
      %202 = vmatprep.subr.bf16.mxu0 0
      %203 = vmatpush1.bf16.msra.mxu0 0
      %204 = vmatprep.subr.bf16.mxu0 0
      %205 = vmatpush1.bf16.msra.mxu0 0
      %206 = vmatprep.subr.bf16.mxu0 0
      %207 = vmatpush1.bf16.msra.mxu0 0
      %208 = vmatprep.subr.bf16.mxu0 0
      %209 = vmatpush1.bf16.msra.mxu0 %v190
      %210 = vmatprep.subr.bf16.mxu0 0
      %211 = vmatpush1.bf16.msra.mxu0 %v189
      %212 = vmatprep.subr.bf16.mxu0 0
      %213 = vmatpush2.bf16.msra.mxu0 0
      %214 = vmatprep.subr.bf16.mxu0 0
      %215 = vmatpush2.bf16.msra.mxu0 0
      %216 = vmatprep.subr.bf16.mxu0 0
      %217 = vmatpush2.bf16.msra.mxu0 0
      %218 = vmatprep.subr.bf16.mxu0 0
      %219 = vmatpush2.bf16.msra.mxu0 0
      %220 = vmatprep.subr.bf16.mxu0 0
      %221 = vmatpush2.bf16.msra.mxu0 0
      %222 = vmatprep.subr.bf16.mxu0 0
      %223 = vmatpush2.bf16.msra.mxu0 0
      %224 = vmatprep.subr.bf16.mxu0 0
      %225 = vmatpush2.bf16.msra.mxu0 0
      %226 = vmatprep.subr.bf16.mxu0 0
      %227 = vmatpush2.bf16.msra.mxu0 0
      %228 = vmatprep.mubr.bf16.mxu0 0
      %229 = vmatmul.mubr.bf16.gmra.mxu0 %v194
      %v230 = vpop.f32.mrf.mxu0
      %v231 = vadd.f32 %v180, %v230
      %v232 = vpop.f32.mrf.mxu0
      %v233 = vpop.f32.mrf.mxu0
      %v234 = vpop.f32.mrf.mxu0
      %235 = vdwg.mxu0
      %v236 = vld [vmem:[%s5] sm:$0x1]
      %v238 = vlaneseq
      %v239 = vshrl.u32 %v238, 7
      %v240 = vsub.s32 0, %v239
      %v241 = vrot.slane %v236, %v240
      %v243 = vadd.f32 %v231, %v241
      %244 = vst [vmem:[#allocation10] sm:$0x3] %v243
    $region45: #{tpu_custom_call.1} parent=1 // pred_fallthru
      _
    // Predicated region
    $region46: #{tpu_custom_call.1} parent=1 // pred_check
      _
    $region47: #{tpu_custom_call.1} parent=1 // pred_check_branch
      %246 = sbr.rel (0) target = $region49
    $region48: #{tpu_custom_call.1} parent=1 // pred_region
      %s248 = ssub.s32 32, 32
      %249 = vsyncadd [#allocation6], %s248
      %s251 = sshll.u32 [#allocation10], 4
      %s252 = int_to_ptr.vmem [resolvable:$true] %s251
      %254 = dma.vmem_to_hbm [thread:$0]  %s252, 32, %s6, [#allocation6]
    $region49: #{tpu_custom_call.1} parent=1 // pred_fallthru
      _
    // Predicated region
    $region50: #{tpu_custom_call.1} parent=1 // pred_check
      _
    $region51: #{tpu_custom_call.1} parent=1 // pred_check_branch
      %256 = sbr.rel (0) target = $region53
    $region52: #{tpu_custom_call.1} parent=1 // pred_region
      %257 = dma.done [#allocation6], 32
    $region53: #{tpu_custom_call.1} parent=1 // pred_fallthru
      _
    %258 = vsyncpa [#allocation5], 1
    %259 = vsyncpa [#allocation8], 1
    %260 = vsyncpa [#allocation6], 1

</llo_original>
